<compile_context>
chip_gen: v7x
topology: tpu7x:2x2x1
jax: 0.10.0
libtpu: 0.0.40
codegen_flags: <defaults>
</compile_context>

<pallas_src>
import jax
import jax.numpy as jnp
from jax.experimental import pallas as pl
from jax.experimental.pallas import tpu as pltpu


def _mlp_kernel(obs_ref, act_ref, w1o_ref, w1a_ref, b1_ref,
                w2_ref, b2_ref, w3_ref, b3_ref, o_ref):
    # Blocks arrive batch-major ([tile, feat]); transpose the small feature
    # slabs in-kernel so the batch lands on lanes for all downstream ops.
    obs_t = obs_ref[...].T                      # [obs_dim, tile]
    act_t = act_ref[...].T                      # [act_dim, tile]

    # Layer 1: split-weight Linear(in, 32) on the (conceptual) concat input.
    h1 = jnp.tanh(
        jnp.dot(w1o_ref[...], obs_t, preferred_element_type=jnp.float32)
        + jnp.dot(w1a_ref[...], act_t, preferred_element_type=jnp.float32)
        + b1_ref[...]                           # [32, 1] broadcasts over lanes
    )
    # Layer 2: Linear(32, 32) + Tanh.
    h2 = jnp.tanh(
        jnp.dot(w2_ref[...], h1, preferred_element_type=jnp.float32) + b2_ref[...]
    )
    # Layer 3: Linear(32, 1).  Output block [1, tile] -> lane-dense unmasked stores.
    o_ref[...] = (
        jnp.dot(w3_ref[...], h2, preferred_element_type=jnp.float32) + b3_ref[...]
    )


def _choose_tile(B, batch_tile):
    """Lane-aligned batch tile; guarantees >=2 grid steps for B > 256 (v7x)."""
    if B <= 256:
        return B                                 # single step, exact block
    aligned_cap = max(128, (int(batch_tile) // 128) * 128)
    half = -(-B // 2)                            # cdiv(B, 2): at least 2 steps
    half_aligned = ((half + 127) // 128) * 128
    return min(aligned_cap, half_aligned)


def reward_f_forward(obs_batch, act_batch, params, *, batch_tile=16384):
    """JAX wrapper. obs_batch: [B, obs_dim], act_batch: [B, act_dim] -> [B, 1]."""
    w1, b1, w2, b2, w3, b3 = params              # PyTorch layout: w [out,in], b [out,1]
    B, obs_dim = obs_batch.shape
    act_dim = act_batch.shape[1]
    H = w1.shape[0]
    in_dim = obs_dim + act_dim

    # Split W1 (tiny slices) so the concat never materializes on the big arrays.
    w1o = w1[:, :obs_dim]
    w1a = w1[:, obs_dim:]

    tile = _choose_tile(B, batch_tile)
    grid = (pl.cdiv(B, tile),)

    bytes_in = obs_batch.dtype.itemsize
    cost = pl.CostEstimate(
        flops=2 * B * (in_dim * H + H * H + H),
        transcendentals=2 * H * B,
        bytes_accessed=bytes_in * B * in_dim + 4 * B
                       + 4 * (in_dim * H + H * H + H + 2 * H + 1),
    )

    out = pl.pallas_call(
        _mlp_kernel,
        out_shape=jax.ShapeDtypeStruct((1, B), jnp.float32),
        grid_spec=pl.GridSpec(
            grid=grid,
            in_specs=[
                pl.BlockSpec((tile, obs_dim), lambda i: (i, 0)),   # obs tile (native layout)
                pl.BlockSpec((tile, act_dim), lambda i: (i, 0)),   # act tile (native layout)
                pl.BlockSpec((H, obs_dim), lambda i: (0, 0)),      # W1_obs (VMEM-resident)
                pl.BlockSpec((H, act_dim), lambda i: (0, 0)),      # W1_act
                pl.BlockSpec((H, 1), lambda i: (0, 0)),            # b1
                pl.BlockSpec((H, H), lambda i: (0, 0)),            # W2
                pl.BlockSpec((H, 1), lambda i: (0, 0)),            # b2
                pl.BlockSpec((1, H), lambda i: (0, 0)),            # W3
                pl.BlockSpec((1, 1), lambda i: (0, 0)),            # b3
            ],
            out_specs=pl.BlockSpec((1, tile), lambda i: (0, i)),   # lane-dense output
        ),
        compiler_params=pltpu.CompilerParams(
            dimension_semantics=("parallel",),
        ),
        cost_estimate=cost,
    )(obs_batch, act_batch, w1o, w1a, b1, w2, b2, w3, b3)

    # [1, B] lane-dense slab -> PyTorch's [B, 1] (trivial reshape, no extra pass).
    return out.reshape(B, 1)


def init_params(key, input_dim, hid_dim=32):
    """Deterministic init mirroring nn.Linear ([out, in] weights, [out, 1] biases)."""
    k1, k2, k3, k4, k5, k6 = jax.random.split(key, 6)

    def lin(kw, kb, fan_in, fan_out):
        bound = 1.0 / jnp.sqrt(fan_in)
        w = jax.random.uniform(kw, (fan_out, fan_in), jnp.float32, -bound, bound)
        b = jax.random.uniform(kb, (fan_out, 1), jnp.float32, -bound, bound)
        return w, b

    w1, b1 = lin(k1, k2, input_dim, hid_dim)
    w2, b2 = lin(k3, k4, hid_dim, hid_dim)
    w3, b3 = lin(k5, k6, hid_dim, 1)
    return (w1, b1, w2, b2, w3, b3)


def reference_forward(obs_batch, act_batch, params):
    w1, b1, w2, b2, w3, b3 = params
    x = jnp.concatenate([obs_batch, act_batch], axis=1).astype(jnp.float32)
    h1 = jnp.tanh(x @ w1.T + b1.T)
    h2 = jnp.tanh(h1 @ w2.T + b2.T)
    return h2 @ w3.T + b3.T


if __name__ == "__main__":
    key = jax.random.PRNGKey(0)
    k_obs, k_act, k_par = jax.random.split(key, 3)

    batch, obs_dim, act_dim = 8, 12, 4
    input_dim = obs_dim + act_dim  # 16

    obs = jax.random.normal(k_obs, (batch, obs_dim), jnp.float32)
    act = jax.random.normal(k_act, (batch, act_dim), jnp.float32)
    params = init_params(k_par, input_dim, hid_dim=32)

    # Small batch: single grid step, exact (un-padded) blocks.
    out = jax.block_until_ready(reward_f_forward(obs, act, params))
    ref = reference_forward(obs, act, params)
    assert out.shape == (batch, 1), out.shape
    assert jnp.allclose(out, ref, atol=1e-5, rtol=1e-5), (out, ref)

    # Multi-step + ragged boundary path: 3 grid steps, last block only 44 valid rows.
    B2 = 300
    obs2 = jax.random.normal(jax.random.PRNGKey(1), (B2, obs_dim), jnp.float32)
    act2 = jax.random.normal(jax.random.PRNGKey(2), (B2, act_dim), jnp.float32)
    out2 = jax.block_until_ready(reward_f_forward(obs2, act2, params, batch_tile=128))
    ref2 = reference_forward(obs2, act2, params)
    assert out2.shape == (B2, 1), out2.shape
    assert jnp.allclose(out2, ref2, atol=1e-5, rtol=1e-5)

    print("KERNEL_OK")
</pallas_src>

<mosaic_0001>
module attributes {stable_mosaic.version = 11 : i64} {
  func.func @_mlp_kernel(%arg0: i32, %arg1: memref<8x12xf32, #tpu.memory_space<vmem>>, %arg2: memref<8x4xf32, #tpu.memory_space<vmem>>, %arg3: memref<32x12xf32, #tpu.memory_space<vmem>>, %arg4: memref<32x4xf32, #tpu.memory_space<vmem>>, %arg5: memref<32x1xf32, #tpu.memory_space<vmem>>, %arg6: memref<32x32xf32, #tpu.memory_space<vmem>>, %arg7: memref<32x1xf32, #tpu.memory_space<vmem>>, %arg8: memref<1x32xf32, #tpu.memory_space<vmem>>, %arg9: memref<1x1xf32, #tpu.memory_space<vmem>>, %arg10: memref<1x8xf32, #tpu.memory_space<vmem>>) attributes {dimension_semantics = [#tpu.dimension_semantics<parallel>], iteration_bounds = array<i64: 1>, scalar_prefetch = 0 : i64, scratch_operands = 0 : i64, tpu.core_type = #tpu.core_type<tc>, window_params = [{transform_indices = @transform_0, window_bounds = array<i64: 8, 12>}, {transform_indices = @transform_1, window_bounds = array<i64: 8, 4>}, {pipeline_mode = #tpu.pipeline_mode<synchronous>, transform_indices = @transform_2, window_bounds = array<i64: 32, 12>}, {pipeline_mode = #tpu.pipeline_mode<synchronous>, transform_indices = @transform_3, window_bounds = array<i64: 32, 4>}, {pipeline_mode = #tpu.pipeline_mode<synchronous>, transform_indices = @transform_4, window_bounds = array<i64: 32, 1>}, {pipeline_mode = #tpu.pipeline_mode<synchronous>, transform_indices = @transform_5, window_bounds = array<i64: 32, 32>}, {pipeline_mode = #tpu.pipeline_mode<synchronous>, transform_indices = @transform_6, window_bounds = array<i64: 32, 1>}, {pipeline_mode = #tpu.pipeline_mode<synchronous>, transform_indices = @transform_7, window_bounds = array<i64: 1, 32>}, {pipeline_mode = #tpu.pipeline_mode<synchronous>, transform_indices = @transform_8, window_bounds = array<i64: 1, 1>}, {transform_indices = @transform_9, window_bounds = array<i64: 1, 8>}]} {
    %c0 = arith.constant 0 : index
    %c0_0 = arith.constant 0 : index
    %0 = vector.load %arg1[%c0, %c0_0] : memref<8x12xf32, #tpu.memory_space<vmem>>, vector<8x12xf32>
    %1 = tpu.transpose %0, [1, 0] : vector<8x12xf32> -> vector<12x8xf32>
    %c0_1 = arith.constant 0 : index
    %c0_2 = arith.constant 0 : index
    %2 = vector.load %arg2[%c0_1, %c0_2] : memref<8x4xf32, #tpu.memory_space<vmem>>, vector<8x4xf32>
    %3 = tpu.transpose %2, [1, 0] : vector<8x4xf32> -> vector<4x8xf32>
    %c0_3 = arith.constant 0 : index
    %c0_4 = arith.constant 0 : index
    %4 = vector.load %arg3[%c0_3, %c0_4] : memref<32x12xf32, #tpu.memory_space<vmem>>, vector<32x12xf32>
    %cst = arith.constant dense<0.000000e+00> : vector<32x8xf32>
    %5 = tpu.matmul %4, %1, %cst {dimension_numbers = #tpu.dot_dimension_numbers<[1], [0], [0], [1], [0, 0, 1, 1], [], []>} : vector<32x12xf32>, vector<12x8xf32>, vector<32x8xf32> -> vector<32x8xf32>
    %c0_5 = arith.constant 0 : index
    %c0_6 = arith.constant 0 : index
    %6 = vector.load %arg4[%c0_5, %c0_6] : memref<32x4xf32, #tpu.memory_space<vmem>>, vector<32x4xf32>
    %cst_7 = arith.constant dense<0.000000e+00> : vector<32x8xf32>
    %7 = tpu.matmul %6, %3, %cst_7 {dimension_numbers = #tpu.dot_dimension_numbers<[1], [0], [0], [1], [0, 0, 1, 1], [], []>} : vector<32x4xf32>, vector<4x8xf32>, vector<32x8xf32> -> vector<32x8xf32>
    %8 = arith.addf %5, %7 : vector<32x8xf32>
    %c0_8 = arith.constant 0 : index
    %c0_9 = arith.constant 0 : index
    %9 = vector.load %arg5[%c0_8, %c0_9] : memref<32x1xf32, #tpu.memory_space<vmem>>, vector<32x1xf32>
    %10 = vector.broadcast %9 : vector<32x1xf32> to vector<32x8xf32>
    %11 = arith.addf %8, %10 : vector<32x8xf32>
    %12 = math.tanh %11 : vector<32x8xf32>
    %c0_10 = arith.constant 0 : index
    %c0_11 = arith.constant 0 : index
    %13 = vector.load %arg6[%c0_10, %c0_11] : memref<32x32xf32, #tpu.memory_space<vmem>>, vector<32x32xf32>
    %cst_12 = arith.constant dense<0.000000e+00> : vector<32x8xf32>
    %14 = tpu.matmul %13, %12, %cst_12 {dimension_numbers = #tpu.dot_dimension_numbers<[1], [0], [0], [1], [0, 0, 1, 1], [], []>} : vector<32x32xf32>, vector<32x8xf32>, vector<32x8xf32> -> vector<32x8xf32>
    %c0_13 = arith.constant 0 : index
    %c0_14 = arith.constant 0 : index
    %15 = vector.load %arg7[%c0_13, %c0_14] : memref<32x1xf32, #tpu.memory_space<vmem>>, vector<32x1xf32>
    %16 = vector.broadcast %15 : vector<32x1xf32> to vector<32x8xf32>
    %17 = arith.addf %14, %16 : vector<32x8xf32>
    %18 = math.tanh %17 : vector<32x8xf32>
    %c0_15 = arith.constant 0 : index
    %c0_16 = arith.constant 0 : index
    %19 = vector.load %arg8[%c0_15, %c0_16] : memref<1x32xf32, #tpu.memory_space<vmem>>, vector<1x32xf32>
    %cst_17 = arith.constant dense<0.000000e+00> : vector<1x8xf32>
    %20 = tpu.matmul %19, %18, %cst_17 {dimension_numbers = #tpu.dot_dimension_numbers<[1], [0], [0], [1], [0, 0, 1, 1], [], []>} : vector<1x32xf32>, vector<32x8xf32>, vector<1x8xf32> -> vector<1x8xf32>
    %c0_18 = arith.constant 0 : index
    %c0_19 = arith.constant 0 : index
    %21 = vector.load %arg9[%c0_18, %c0_19] : memref<1x1xf32, #tpu.memory_space<vmem>>, vector<1x1xf32>
    %22 = vector.broadcast %21 : vector<1x1xf32> to vector<1x8xf32>
    %23 = arith.addf %20, %22 : vector<1x8xf32>
    %c0_20 = arith.constant 0 : index
    %c0_21 = arith.constant 0 : index
    %24 = vector.load %arg10[%c0_20, %c0_21] : memref<1x8xf32, #tpu.memory_space<vmem>>, vector<1x8xf32>
    tpu.vector_store %arg10[%c0_20, %c0_21], %23 {strides = array<i32>} : memref<1x8xf32, #tpu.memory_space<vmem>>, vector<1x8xf32>,
    return
  }
  func.func @transform_0(%arg0: i32) -> (i32, i32) {
    %c0_i32 = arith.constant 0 : i32
    %c0_i32_0 = arith.constant 0 : i32
    return %arg0, %c0_i32 : i32, i32
  }
  func.func @transform_1(%arg0: i32) -> (i32, i32) {
    %c0_i32 = arith.constant 0 : i32
    %c0_i32_0 = arith.constant 0 : i32
    return %arg0, %c0_i32 : i32, i32
  }
  func.func @transform_2(%arg0: i32) -> (i32, i32) {
    %c0_i32 = arith.constant 0 : i32
    %c0_i32_0 = arith.constant 0 : i32
    %c0_i32_1 = arith.constant 0 : i32
    return %c0_i32, %c0_i32_0 : i32, i32
  }
  func.func @transform_3(%arg0: i32) -> (i32, i32) {
    %c0_i32 = arith.constant 0 : i32
    %c0_i32_0 = arith.constant 0 : i32
    %c0_i32_1 = arith.constant 0 : i32
    return %c0_i32, %c0_i32_0 : i32, i32
  }
  func.func @transform_4(%arg0: i32) -> (i32, i32) {
    %c0_i32 = arith.constant 0 : i32
    %c0_i32_0 = arith.constant 0 : i32
    %c0_i32_1 = arith.constant 0 : i32
    return %c0_i32, %c0_i32_0 : i32, i32
  }
  func.func @transform_5(%arg0: i32) -> (i32, i32) {
    %c0_i32 = arith.constant 0 : i32
    %c0_i32_0 = arith.constant 0 : i32
    %c0_i32_1 = arith.constant 0 : i32
    return %c0_i32, %c0_i32_0 : i32, i32
  }
  func.func @transform_6(%arg0: i32) -> (i32, i32) {
    %c0_i32 = arith.constant 0 : i32
    %c0_i32_0 = arith.constant 0 : i32
    %c0_i32_1 = arith.constant 0 : i32
    return %c0_i32, %c0_i32_0 : i32, i32
  }
  func.func @transform_7(%arg0: i32) -> (i32, i32) {
    %c0_i32 = arith.constant 0 : i32
    %c0_i32_0 = arith.constant 0 : i32
    %c0_i32_1 = arith.constant 0 : i32
    return %c0_i32, %c0_i32_0 : i32, i32
  }
  func.func @transform_8(%arg0: i32) -> (i32, i32) {
    %c0_i32 = arith.constant 0 : i32
    %c0_i32_0 = arith.constant 0 : i32
    %c0_i32_1 = arith.constant 0 : i32
    return %c0_i32, %c0_i32_0 : i32, i32
  }
  func.func @transform_9(%arg0: i32) -> (i32, i32) {
    %c0_i32 = arith.constant 0 : i32
    %c0_i32_0 = arith.constant 0 : i32
    return %c0_i32, %arg0 : i32, i32
  }
}

</mosaic_0001>

<llo_original>
// kernel: tpu_custom_call.1
$region0: #{tpu_custom_call.1}
  #allocation0 [shape = 'u32[]', space=smem, size = 0x4, offset = 0x4, fixed_abs, tag = 'smem constant byte address 0x4 - core index']
  #allocation1 [shape = 'u32[144,128]{1,0:T(1,128)}', space=vmem, size = 0x12000, scoped, tag = 'internal scratch']
  #allocation2 [shape = 'f32[1,1]{1,0:T(1,128)S(1)}', space=vmem, size = 0x200, scoped, tag = 'scoped memory for tpu_custom_call.1']
  %s0 = inlined_call_operand.vmem [shape: f32[8,12], index: 0, kind: input, shape index: {}]
  %s1 = inlined_call_operand.vmem [shape: f32[8,4], index: 1, kind: input, shape index: {}]
  %s2 = inlined_call_operand.vmem [shape: f32[32,12], index: 2, kind: input, shape index: {}]
  %s3 = inlined_call_operand.vmem [shape: f32[32,4], index: 3, kind: input, shape index: {}]
  %s4 = inlined_call_operand.vmem [shape: f32[32,1], index: 4, kind: input, shape index: {}]
  %s5 = inlined_call_operand.vmem [shape: f32[32,32], index: 5, kind: input, shape index: {}]
  %s6 = inlined_call_operand.vmem [shape: f32[32,1], index: 6, kind: input, shape index: {}]
  %s7 = inlined_call_operand.vmem [shape: f32[1,32], index: 7, kind: input, shape index: {}]
  %s8 = inlined_call_operand.<no memory space> [shape: f32[1,1], index: 8, kind: input, shape index: {}]
  %s9 = inlined_call_operand.hbm [shape: f32[1,8], index: 9, kind: output, shape index: {}]
  %s10 = sld [smem:[#allocation0]]
  $region46: #{tpu_custom_call.1} parent=0
    _
  %s12 = ssub.s32 1, %s10
  %s13 = scalar_select 0, %s12, %s10
  %v14 = vstv %s8
  %15 = vst [vmem:[#allocation2] sm:$0x1] %v14
  $region1: #{tpu_custom_call.1} parent=0
    #allocation3 [shape = 'u8[512]{0}', space=vmem, size = 0x400, scoped, tag = 'output window, operand 0, single buffered']
    #allocation4 [shape = 's32[1]{0}', space=sflag, size = 0x4, scoped, tag = 'scoped memory for tpu_custom_call.1']
    %16 = vsyncpa [#allocation4], 0
    // Predicated region
    $region2: #{tpu_custom_call.1} parent=1 // pred_check
      _
    $region3: #{tpu_custom_call.1} parent=1 // pred_check_branch
      %18 = sbr.rel (0) target = $region5
    $region4: #{tpu_custom_call.1} parent=1 // pred_region
      _
    $region5: #{tpu_custom_call.1} parent=1 // pred_fallthru
      _
    // Predicated region
    $region6: #{tpu_custom_call.1} parent=1 // pred_check
      _
    $region7: #{tpu_custom_call.1} parent=1 // pred_check_branch
      %20 = sbr.rel (0) target = $region9
    $region8: #{tpu_custom_call.1} parent=1 // pred_region
      _
    $region9: #{tpu_custom_call.1} parent=1 // pred_fallthru
      _
    // Predicated region
    $region10: #{tpu_custom_call.1} parent=1 // pred_check
      _
    $region11: #{tpu_custom_call.1} parent=1 // pred_check_branch
      %22 = sbr.rel (0) target = $region13
    $region12: #{tpu_custom_call.1} parent=1 // pred_region
      _
    $region13: #{tpu_custom_call.1} parent=1 // pred_fallthru
      _
    // Predicated region
    $region14: #{tpu_custom_call.1} parent=1 // pred_check
      _
    $region15: #{tpu_custom_call.1} parent=1 // pred_check_branch
      %24 = sbr.rel (0) target = $region17
    $region16: #{tpu_custom_call.1} parent=1 // pred_region
      _
    $region17: #{tpu_custom_call.1} parent=1 // pred_fallthru
      _
    // Predicated region
    $region18: #{tpu_custom_call.1} parent=1 // pred_check
      _
    $region19: #{tpu_custom_call.1} parent=1 // pred_check_branch
      %26 = sbr.rel (0) target = $region21
    $region20: #{tpu_custom_call.1} parent=1 // pred_region
      _
    $region21: #{tpu_custom_call.1} parent=1 // pred_fallthru
      _
    // Predicated region
    $region22: #{tpu_custom_call.1} parent=1 // pred_check
      _
    $region23: #{tpu_custom_call.1} parent=1 // pred_check_branch
      %28 = sbr.rel (0) target = $region25
    $region24: #{tpu_custom_call.1} parent=1 // pred_region
      _
    $region25: #{tpu_custom_call.1} parent=1 // pred_fallthru
      _
    // Predicated region
    $region26: #{tpu_custom_call.1} parent=1 // pred_check
      _
    $region27: #{tpu_custom_call.1} parent=1 // pred_check_branch
      %30 = sbr.rel (0) target = $region29
    $region28: #{tpu_custom_call.1} parent=1 // pred_region
      _
    $region29: #{tpu_custom_call.1} parent=1 // pred_fallthru
      _
    // Predicated region
    $region30: #{tpu_custom_call.1} parent=1 // pred_check
      _
    $region31: #{tpu_custom_call.1} parent=1 // pred_check_branch
      %32 = sbr.rel (0) target = $region33
    $region32: #{tpu_custom_call.1} parent=1 // pred_region
      _
    $region33: #{tpu_custom_call.1} parent=1 // pred_fallthru
      _
    // Predicated region
    $region34: #{tpu_custom_call.1} parent=1 // pred_check
      _
    $region35: #{tpu_custom_call.1} parent=1 // pred_check_branch
      %34 = sbr.rel (0) target = $region37
    $region36: #{tpu_custom_call.1} parent=1 // pred_region
      _
    $region37: #{tpu_custom_call.1} parent=1 // pred_fallthru
      _
    %v35 = vld [vmem:[%s0] sm:$0xff]
    %v36 = vld [vmem:[%s1] sm:$0xff]
    %v37 = vld [vmem:[%s2] sm:$0xff]
    %v38 = vld [vmem:[%s2 + $0x8] sm:$0xff]
    %v39 = vld [vmem:[%s2 + $0x10] sm:$0xff]
    %v40 = vld [vmem:[%s2 + $0x18] sm:$0xff]
    %v41 = vld [vmem:[%s3] sm:$0xff]
    %v42 = vld [vmem:[%s3 + $0x8] sm:$0xff]
    %v43 = vld [vmem:[%s3 + $0x10] sm:$0xff]
    %v44 = vld [vmem:[%s3 + $0x18] sm:$0xff]
    %vm45 = vcmask 31744
    %v47 = vsel %vm45, %v41, 0
    %v50 = vsel %vm45, %v42, 0
    %v53 = vsel %vm45, %v43, 0
    %v56 = vsel %vm45, %v44, 0
    %v59 = vsel %vm45, %v36, 0
    %61 = vmatprep.subr.mxu0 0.0
    %62 = vmatpush1.xpose.msra.mxu0 %v59
    %63 = vmatprep.subr.mxu0 0.0
    %64 = vmatpush1.xpose.msra.mxu0 0.0
    %65 = vmatprep.subr.mxu0 0.0
    %66 = vmatpush1.xpose.msra.mxu0 0.0
    %67 = vmatprep.subr.mxu0 0.0
    %68 = vmatpush1.xpose.msra.mxu0 0.0
    %69 = vmatprep.subr.mxu0 0.0
    %70 = vmatpush1.xpose.msra.mxu0 0.0
    %71 = vmatprep.subr.mxu0 0.0
    %72 = vmatpush1.xpose.msra.mxu0 0.0
    %73 = vmatprep.subr.mxu0 0.0
    %74 = vmatpush1.xpose.msra.mxu0 0.0
    %75 = vmatprep.subr.mxu0 0.0
    %76 = vmatpush1.xpose.msra.mxu0 0.0
    %77 = vmatprep.subr.mxu0 0.0
    %78 = vmatpush1.xpose.msra.mxu0 0.0
    %79 = vmatprep.subr.mxu0 0.0
    %80 = vmatpush1.xpose.msra.mxu0 0.0
    %81 = vmatprep.subr.mxu0 0.0
    %82 = vmatpush1.xpose.msra.mxu0 0.0
    %83 = vmatprep.subr.mxu0 0.0
    %84 = vmatpush1.xpose.msra.mxu0 0.0
    %85 = vmatprep.subr.mxu0 0.0
    %86 = vmatpush1.xpose.msra.mxu0 0.0
    %87 = vmatprep.subr.mxu0 0.0
    %88 = vmatpush1.xpose.msra.mxu0 0.0
    %89 = vmatprep.subr.mxu0 0.0
    %90 = vmatpush1.xpose.msra.mxu0 0.0
    %91 = vmatprep.subr.mxu0 0.0
    %92 = vmatpush1.xpose.msra.mxu0 0.0
    %93 = vmatprep.subr.mxu0 0.0
    %94 = vmatpush1.xpose.msra.mxu0 0.0
    %95 = vmatprep.subr.mxu0 0.0
    %96 = vmatpush1.xpose.msra.mxu0 0.0
    %97 = vmatprep.subr.mxu0 0.0
    %98 = vmatpush1.xpose.msra.mxu0 0.0
    %99 = vmatprep.subr.mxu0 0.0
    %100 = vmatpush1.xpose.msra.mxu0 0.0
    %101 = vmatprep.subr.mxu0 0.0
    %102 = vmatpush1.xpose.msra.mxu0 0.0
    %103 = vmatprep.subr.mxu0 0.0
    %104 = vmatpush1.xpose.msra.mxu0 0.0
    %105 = vmatprep.subr.mxu0 0.0
    %106 = vmatpush1.xpose.msra.mxu0 0.0
    %107 = vmatprep.subr.mxu0 0.0
    %108 = vmatpush1.xpose.msra.mxu0 0.0
    %109 = vmatprep.subr.mxu0 0.0
    %110 = vmatpush1.xpose.msra.mxu0 0.0
    %111 = vmatprep.subr.mxu0 0.0
    %112 = vmatpush1.xpose.msra.mxu0 0.0
    %113 = vmatprep.subr.mxu0 0.0
    %114 = vmatpush1.xpose.msra.mxu0 0.0
    %115 = vmatprep.subr.mxu0 0.0
    %116 = vmatpush1.xpose.msra.mxu0 0.0
    %117 = vmatprep.subr.mxu0 0.0
    %118 = vmatpush1.xpose.msra.mxu0 0.0
    %119 = vmatprep.subr.mxu0 0.0
    %120 = vmatpush1.xpose.msra.mxu0 0.0
    %121 = vmatprep.subr.mxu0 0.0
    %122 = vmatpush1.xpose.msra.mxu0 0.0
    %123 = vmatprep.subr.mxu0 0.0
    %124 = vmatpush1.xpose.msra.mxu0 0.0
    %125 = vmatprep.mubr.f32.mxu0 0.0
    %126 = vmatmul.mubr.f32.gmra.mrb[0].mxu0 %v47
    %v127 = vpop.f32.mrb[0].mxu0
    %v128 = vadd.f32 0.0, %v127
    %v129 = vpop.f32.mrb[0].mxu0
    %130 = vmatprep.mubr.f32.mxu0 0.0
    %131 = vmatmul.mubr.f32.gmra.mrb[0].mxu0 %v50
    %v132 = vpop.f32.mrb[0].mxu0
    %v133 = vadd.f32 0.0, %v132
    %v134 = vpop.f32.mrb[0].mxu0
    %135 = vmatprep.mubr.f32.mxu0 0.0
    %136 = vmatmul.mubr.f32.gmra.mrb[0].mxu0 %v53
    %v137 = vpop.f32.mrb[0].mxu0
    %v138 = vadd.f32 0.0, %v137
    %v139 = vpop.f32.mrb[0].mxu0
    %140 = vmatprep.mubr.f32.mxu0 0.0
    %141 = vmatmul.mubr.f32.gmra.mrb[0].mxu0 %v56
    %v142 = vpop.f32.mrb[0].mxu0
    %v143 = vadd.f32 0.0, %v142
    %v144 = vpop.f32.mrb[0].mxu0
    %145 = vdwg.mxu0
    %vm146 = vcmask 97280
    %v148 = vsel %vm146, %v37, 0
    %v151 = vsel %vm146, %v38, 0
    %v154 = vsel %vm146, %v39, 0
    %v157 = vsel %vm146, %v40, 0
    %v160 = vsel %vm146, %v35, 0
    %162 = vmatprep.subr.mxu0 0.0
    %163 = vmatpush1.xpose.msra.mxu0 %v160
    %164 = vmatprep.subr.mxu0 0.0
    %165 = vmatpush1.xpose.msra.mxu0 0.0
    %166 = vmatprep.subr.mxu0 0.0
    %167 = vmatpush1.xpose.msra.mxu0 0.0
    %168 = vmatprep.subr.mxu0 0.0
    %169 = vmatpush1.xpose.msra.mxu0 0.0
    %170 = vmatprep.subr.mxu0 0.0
    %171 = vmatpush1.xpose.msra.mxu0 0.0
    %172 = vmatprep.subr.mxu0 0.0
    %173 = vmatpush1.xpose.msra.mxu0 0.0
    %174 = vmatprep.subr.mxu0 0.0
    %175 = vmatpush1.xpose.msra.mxu0 0.0
    %176 = vmatprep.subr.mxu0 0.0
    %177 = vmatpush1.xpose.msra.mxu0 0.0
    %178 = vmatprep.subr.mxu0 0.0
    %179 = vmatpush1.xpose.msra.mxu0 0.0
    %180 = vmatprep.subr.mxu0 0.0
    %181 = vmatpush1.xpose.msra.mxu0 0.0
    %182 = vmatprep.subr.mxu0 0.0
    %183 = vmatpush1.xpose.msra.mxu0 0.0
    %184 = vmatprep.subr.mxu0 0.0
    %185 = vmatpush1.xpose.msra.mxu0 0.0
    %186 = vmatprep.subr.mxu0 0.0
    %187 = vmatpush1.xpose.msra.mxu0 0.0
    %188 = vmatprep.subr.mxu0 0.0
    %189 = vmatpush1.xpose.msra.mxu0 0.0
    %190 = vmatprep.subr.mxu0 0.0
    %191 = vmatpush1.xpose.msra.mxu0 0.0
    %192 = vmatprep.subr.mxu0 0.0
    %193 = vmatpush1.xpose.msra.mxu0 0.0
    %194 = vmatprep.subr.mxu0 0.0
    %195 = vmatpush1.xpose.msra.mxu0 0.0
    %196 = vmatprep.subr.mxu0 0.0
    %197 = vmatpush1.xpose.msra.mxu0 0.0
    %198 = vmatprep.subr.mxu0 0.0
    %199 = vmatpush1.xpose.msra.mxu0 0.0
    %200 = vmatprep.subr.mxu0 0.0
    %201 = vmatpush1.xpose.msra.mxu0 0.0
    %202 = vmatprep.subr.mxu0 0.0
    %203 = vmatpush1.xpose.msra.mxu0 0.0
    %204 = vmatprep.subr.mxu0 0.0
    %205 = vmatpush1.xpose.msra.mxu0 0.0
    %206 = vmatprep.subr.mxu0 0.0
    %207 = vmatpush1.xpose.msra.mxu0 0.0
    %208 = vmatprep.subr.mxu0 0.0
    %209 = vmatpush1.xpose.msra.mxu0 0.0
    %210 = vmatprep.subr.mxu0 0.0
    %211 = vmatpush1.xpose.msra.mxu0 0.0
    %212 = vmatprep.subr.mxu0 0.0
    %213 = vmatpush1.xpose.msra.mxu0 0.0
    %214 = vmatprep.subr.mxu0 0.0
    %215 = vmatpush1.xpose.msra.mxu0 0.0
    %216 = vmatprep.subr.mxu0 0.0
    %217 = vmatpush1.xpose.msra.mxu0 0.0
    %218 = vmatprep.subr.mxu0 0.0
    %219 = vmatpush1.xpose.msra.mxu0 0.0
    %220 = vmatprep.subr.mxu0 0.0
    %221 = vmatpush1.xpose.msra.mxu0 0.0
    %222 = vmatprep.subr.mxu0 0.0
    %223 = vmatpush1.xpose.msra.mxu0 0.0
    %224 = vmatprep.subr.mxu0 0.0
    %225 = vmatpush1.xpose.msra.mxu0 0.0
    %226 = vmatprep.mubr.f32.mxu0 0.0
    %227 = vmatmul.mubr.f32.gmra.mrb[0].mxu0 %v148
    %v228 = vpop.f32.mrb[0].mxu0
    %v229 = vadd.f32 %v128, %v228
    %v230 = vpop.f32.mrb[0].mxu0
    %231 = vmatprep.mubr.f32.mxu0 0.0
    %232 = vmatmul.mubr.f32.gmra.mrb[0].mxu0 %v151
    %v233 = vpop.f32.mrb[0].mxu0
    %v234 = vadd.f32 %v133, %v233
    %v235 = vpop.f32.mrb[0].mxu0
    %236 = vmatprep.mubr.f32.mxu0 0.0
    %237 = vmatmul.mubr.f32.gmra.mrb[0].mxu0 %v154
    %v238 = vpop.f32.mrb[0].mxu0
    %v239 = vadd.f32 %v138, %v238
    %v240 = vpop.f32.mrb[0].mxu0
    %241 = vmatprep.mubr.f32.mxu0 0.0
    %242 = vmatmul.mubr.f32.gmra.mrb[0].mxu0 %v157
    %v243 = vpop.f32.mrb[0].mxu0
    %v244 = vadd.f32 %v143, %v243
    %v245 = vpop.f32.mrb[0].mxu0
    %246 = vdwg.mxu0
    %v247 = vld [vmem:[%s4] sm:$0xff]
    %v248 = vld [vmem:[%s4 + $0x8] sm:$0xff]
    %v249 = vld [vmem:[%s4 + $0x10] sm:$0xff]
    %v250 = vld [vmem:[%s4 + $0x18] sm:$0xff]
    %252 = vset.pattern.permute.xlu0 0
    %253 = vperm.xlu0 %252, %v247
    %v254 = vpop.permute.xlu0 %253
    %257 = vset.pattern.permute.xlu0 0
    %258 = vperm.xlu0 %257, %v248
    %v259 = vpop.permute.xlu0 %258
    %262 = vset.pattern.permute.xlu0 0
    %263 = vperm.xlu0 %262, %v249
    %v264 = vpop.permute.xlu0 %263
    %267 = vset.pattern.permute.xlu0 0
    %268 = vperm.xlu0 %267, %v250
    %v269 = vpop.permute.xlu0 %268
    %v271 = vadd.f32 %v229, %v254
    %v272 = vadd.f32 %v234, %v259
    %v273 = vadd.f32 %v239, %v264
    %v274 = vadd.f32 %v244, %v269
    %v275 = vtanh.pop %v271
    %v276 = vtanh.pop %v272
    %v277 = vtanh.pop %v273
    %v278 = vtanh.pop %v274
    %v279 = vld [vmem:[%s5] sm:$0xff]
    %v280 = vld [vmem:[%s5 + $0x8] sm:$0xff]
    %v281 = vld [vmem:[%s5 + $0x10] sm:$0xff]
    %v282 = vld [vmem:[%s5 + $0x18] sm:$0xff]
    %v283 = vld [vmem:[%s6] sm:$0xff]
    %v284 = vld [vmem:[%s6 + $0x8] sm:$0xff]
    %v285 = vld [vmem:[%s6 + $0x10] sm:$0xff]
    %v286 = vld [vmem:[%s6 + $0x18] sm:$0xff]
    %288 = vset.pattern.permute.xlu0 0
    %289 = vperm.xlu0 %288, %v283
    %v290 = vpop.permute.xlu0 %289
    %293 = vset.pattern.permute.xlu0 0
    %294 = vperm.xlu0 %293, %v284
    %v295 = vpop.permute.xlu0 %294
    %298 = vset.pattern.permute.xlu0 0
    %299 = vperm.xlu0 %298, %v285
    %v300 = vpop.permute.xlu0 %299
    %303 = vset.pattern.permute.xlu0 0
    %304 = vperm.xlu0 %303, %v286
    %v305 = vpop.permute.xlu0 %304
    %vm307 = vcmask 261120
    %v309 = vsel %vm307, %v279, 0
    %v312 = vsel %vm307, %v280, 0
    %v315 = vsel %vm307, %v281, 0
    %v318 = vsel %vm307, %v282, 0
    %320 = vmatprep.subr.mxu0 0.0
    %321 = vmatpush1.msra.mxu0 %v275
    %322 = vmatprep.subr.mxu0 0.0
    %323 = vmatpush1.msra.mxu0 %v276
    %324 = vmatprep.subr.mxu0 0.0
    %325 = vmatpush1.msra.mxu0 %v277
    %326 = vmatprep.subr.mxu0 0.0
    %327 = vmatpush1.msra.mxu0 %v278
    %328 = vmatprep.subr.mxu0 0.0
    %329 = vmatpush1.msra.mxu0 0.0
    %330 = vmatprep.subr.mxu0 0.0
    %331 = vmatpush1.msra.mxu0 0.0
    %332 = vmatprep.subr.mxu0 0.0
    %333 = vmatpush1.msra.mxu0 0.0
    %334 = vmatprep.subr.mxu0 0.0
    %335 = vmatpush1.msra.mxu0 0.0
    %336 = vmatprep.subr.mxu0 0.0
    %337 = vmatpush1.msra.mxu0 0.0
    %338 = vmatprep.subr.mxu0 0.0
    %339 = vmatpush1.msra.mxu0 0.0
    %340 = vmatprep.subr.mxu0 0.0
    %341 = vmatpush1.msra.mxu0 0.0
    %342 = vmatprep.subr.mxu0 0.0
    %343 = vmatpush1.msra.mxu0 0.0
    %344 = vmatprep.subr.mxu0 0.0
    %345 = vmatpush1.msra.mxu0 0.0
    %346 = vmatprep.subr.mxu0 0.0
    %347 = vmatpush1.msra.mxu0 0.0
    %348 = vmatprep.subr.mxu0 0.0
    %349 = vmatpush1.msra.mxu0 0.0
    %350 = vmatprep.subr.mxu0 0.0
    %351 = vmatpush1.msra.mxu0 0.0
    %352 = vmatprep.subr.mxu0 0.0
    %353 = vmatpush1.msra.mxu0 0.0
    %354 = vmatprep.subr.mxu0 0.0
    %355 = vmatpush1.msra.mxu0 0.0
    %356 = vmatprep.subr.mxu0 0.0
    %357 = vmatpush1.msra.mxu0 0.0
    %358 = vmatprep.subr.mxu0 0.0
    %359 = vmatpush1.msra.mxu0 0.0
    %360 = vmatprep.subr.mxu0 0.0
    %361 = vmatpush1.msra.mxu0 0.0
    %362 = vmatprep.subr.mxu0 0.0
    %363 = vmatpush1.msra.mxu0 0.0
    %364 = vmatprep.subr.mxu0 0.0
    %365 = vmatpush1.msra.mxu0 0.0
    %366 = vmatprep.subr.mxu0 0.0
    %367 = vmatpush1.msra.mxu0 0.0
    %368 = vmatprep.subr.mxu0 0.0
    %369 = vmatpush1.msra.mxu0 0.0
    %370 = vmatprep.subr.mxu0 0.0
    %371 = vmatpush1.msra.mxu0 0.0
    %372 = vmatprep.subr.mxu0 0.0
    %373 = vmatpush1.msra.mxu0 0.0
    %374 = vmatprep.subr.mxu0 0.0
    %375 = vmatpush1.msra.mxu0 0.0
    %376 = vmatprep.subr.mxu0 0.0
    %377 = vmatpush1.msra.mxu0 0.0
    %378 = vmatprep.subr.mxu0 0.0
    %379 = vmatpush1.msra.mxu0 0.0
    %380 = vmatprep.subr.mxu0 0.0
    %381 = vmatpush1.msra.mxu0 0.0
    %382 = vmatprep.subr.mxu0 0.0
    %383 = vmatpush1.msra.mxu0 0.0
    %384 = vmatprep.mubr.f32.mxu0 0.0
    %385 = vmatmul.mubr.f32.gmra.mrb[0].mxu0 %v309
    %v386 = vpop.f32.mrb[0].mxu0
    %v387 = vadd.f32 %v290, %v386
    %v388 = vpop.f32.mrb[0].mxu0
    %389 = vmatprep.mubr.f32.mxu0 0.0
    %390 = vmatmul.mubr.f32.gmra.mrb[0].mxu0 %v312
    %v391 = vpop.f32.mrb[0].mxu0
    %v392 = vadd.f32 %v295, %v391
    %v393 = vpop.f32.mrb[0].mxu0
    %394 = vmatprep.mubr.f32.mxu0 0.0
    %395 = vmatmul.mubr.f32.gmra.mrb[0].mxu0 %v315
    %v396 = vpop.f32.mrb[0].mxu0
    %v397 = vadd.f32 %v300, %v396
    %v398 = vpop.f32.mrb[0].mxu0
    %399 = vmatprep.mubr.f32.mxu0 0.0
    %400 = vmatmul.mubr.f32.gmra.mrb[0].mxu0 %v318
    %v401 = vpop.f32.mrb[0].mxu0
    %v402 = vadd.f32 %v305, %v401
    %v403 = vpop.f32.mrb[0].mxu0
    %404 = vdwg.mxu0
    %v405 = vtanh.pop %v387
    %v406 = vtanh.pop %v392
    %v407 = vtanh.pop %v397
    %v408 = vtanh.pop %v402
    %v409 = vld [vmem:[%s7] sm:$0x1]
    %v410 = vld [vmem:[#allocation2] sm:$0x1]
    %412 = vset.pattern.permute.xlu0 0
    %413 = vperm.xlu0 %412, %v410
    %v414 = vpop.permute.xlu0 %413
    %v416 = vlaneseq
    %v417 = vshrl.u32 %v416, 7
    %v418 = vsub.s32 0, %v417
    %v419 = vrot.slane %v414, %v418
    %v421 = vsel %vm307, %v409, 0
    %423 = vmatprep.subr.mxu0 0.0
    %424 = vmatpush1.msra.mxu0 %v405
    %425 = vmatprep.subr.mxu0 0.0
    %426 = vmatpush1.msra.mxu0 %v406
    %427 = vmatprep.subr.mxu0 0.0
    %428 = vmatpush1.msra.mxu0 %v407
    %429 = vmatprep.subr.mxu0 0.0
    %430 = vmatpush1.msra.mxu0 %v408
    %431 = vmatprep.subr.mxu0 0.0
    %432 = vmatpush1.msra.mxu0 0.0
    %433 = vmatprep.subr.mxu0 0.0
    %434 = vmatpush1.msra.mxu0 0.0
    %435 = vmatprep.subr.mxu0 0.0
    %436 = vmatpush1.msra.mxu0 0.0
    %437 = vmatprep.subr.mxu0 0.0
    %438 = vmatpush1.msra.mxu0 0.0
    %439 = vmatprep.subr.mxu0 0.0
    %440 = vmatpush1.msra.mxu0 0.0
    %441 = vmatprep.subr.mxu0 0.0
    %442 = vmatpush1.msra.mxu0 0.0
    %443 = vmatprep.subr.mxu0 0.0
    %444 = vmatpush1.msra.mxu0 0.0
    %445 = vmatprep.subr.mxu0 0.0
    %446 = vmatpush1.msra.mxu0 0.0
    %447 = vmatprep.subr.mxu0 0.0
    %448 = vmatpush1.msra.mxu0 0.0
    %449 = vmatprep.subr.mxu0 0.0
    %450 = vmatpush1.msra.mxu0 0.0
    %451 = vmatprep.subr.mxu0 0.0
    %452 = vmatpush1.msra.mxu0 0.0
    %453 = vmatprep.subr.mxu0 0.0
    %454 = vmatpush1.msra.mxu0 0.0
    %455 = vmatprep.subr.mxu0 0.0
    %456 = vmatpush1.msra.mxu0 0.0
    %457 = vmatprep.subr.mxu0 0.0
    %458 = vmatpush1.msra.mxu0 0.0
    %459 = vmatprep.subr.mxu0 0.0
    %460 = vmatpush1.msra.mxu0 0.0
    %461 = vmatprep.subr.mxu0 0.0
    %462 = vmatpush1.msra.mxu0 0.0
    %463 = vmatprep.subr.mxu0 0.0
    %464 = vmatpush1.msra.mxu0 0.0
    %465 = vmatprep.subr.mxu0 0.0
    %466 = vmatpush1.msra.mxu0 0.0
    %467 = vmatprep.subr.mxu0 0.0
    %468 = vmatpush1.msra.mxu0 0.0
    %469 = vmatprep.subr.mxu0 0.0
    %470 = vmatpush1.msra.mxu0 0.0
    %471 = vmatprep.subr.mxu0 0.0
    %472 = vmatpush1.msra.mxu0 0.0
    %473 = vmatprep.subr.mxu0 0.0
    %474 = vmatpush1.msra.mxu0 0.0
    %475 = vmatprep.subr.mxu0 0.0
    %476 = vmatpush1.msra.mxu0 0.0
    %477 = vmatprep.subr.mxu0 0.0
    %478 = vmatpush1.msra.mxu0 0.0
    %479 = vmatprep.subr.mxu0 0.0
    %480 = vmatpush1.msra.mxu0 0.0
    %481 = vmatprep.subr.mxu0 0.0
    %482 = vmatpush1.msra.mxu0 0.0
    %483 = vmatprep.subr.mxu0 0.0
    %484 = vmatpush1.msra.mxu0 0.0
    %485 = vmatprep.subr.mxu0 0.0
    %486 = vmatpush1.msra.mxu0 0.0
    %487 = vmatprep.mubr.f32.mxu0 0.0
    %488 = vmatmul.mubr.f32.gmra.mrb[0].mxu0 %v421
    %v489 = vpop.f32.mrb[0].mxu0
    %v490 = vadd.f32 %v419, %v489
    %v491 = vpop.f32.mrb[0].mxu0
    %492 = vdwg.mxu0
    %vm493 = vcmask 57344
    %494 = vst.msk [vmem:[#allocation3] sm:$0x1] %vm493, %v490
    // Predicated region
    $region38: #{tpu_custom_call.1} parent=1 // pred_check
      _
    $region39: #{tpu_custom_call.1} parent=1 // pred_check_branch
      %496 = sbr.rel (0) target = $region41
    $region40: #{tpu_custom_call.1} parent=1 // pred_region
      %s498 = ssub.s32 16, 16
      %499 = vsyncadd [#allocation4], %s498
      %s501 = sshll.u32 [#allocation3], 4
      %s502 = int_to_ptr.vmem [resolvable:$true] %s501
      %504 = dma.vmem_to_hbm [thread:$0]  %s502, 16, %s9, [#allocation4]
    $region41: #{tpu_custom_call.1} parent=1 // pred_fallthru
      _
    // Predicated region
    $region42: #{tpu_custom_call.1} parent=1 // pred_check
      _
    $region43: #{tpu_custom_call.1} parent=1 // pred_check_branch
      %506 = sbr.rel (0) target = $region45
    $region44: #{tpu_custom_call.1} parent=1 // pred_region
      %507 = dma.done [#allocation4], 16
    $region45: #{tpu_custom_call.1} parent=1 // pred_fallthru
      _
    %508 = vsyncpa [#allocation4], 1

</llo_original>
